<compile_context>
chip_gen: v5e
topology: v5e:2x2
jax: 0.10.0
libtpu: 0.0.40
codegen_flags: <defaults>
</compile_context>

<pallas_src>
import jax
import jax.numpy as jnp
from jax.experimental import pallas as pl
from jax.experimental.pallas import tpu as pltpu

_PACK = 8                    # logical rows packed per lane-dense kernel row
_C_IN = 3                    # conv input channels
_C_OUT = 16                  # concatenated feature width (8 conv + 8 linear)
_K_PACKED = _PACK * _C_IN    # 24
_N_PACKED = _PACK * _C_OUT   # 128 (one full lane group)
_BM_MAX = 4096               # packed rows / grid step (~2.4 MB HBM traffic,
                             #  ~8 MiB double-buffered VMEM -> fits all gens)


def _fused_kernel(x_ref, w_ref, b_ref, out_ref):
    # x_ref  : (BM, 24)   8 logical input rows packed per row
    # w_ref  : (24, 128)  block-diag of 8 copies of W_cat = [Wc^T | Wc^T @ Wl^T]
    # b_ref  : (1, 128)   b_cat = [bc | bc @ Wl^T] tiled 8x
    # out_ref: (BM, 128)  lane-dense packed [v1 | v3] (8 logical rows per row)
    out_ref[...] = (
        jnp.dot(x_ref[...], w_ref[...], preferred_element_type=jnp.float32)
        + b_ref[...]
    ).astype(out_ref.dtype)


@jax.jit
def model_forward(x_nchw, conv_w, conv_b, lin_w):
    """x_nchw: (N, 3, 1, 1); conv_w: (8, 3, 1, 1); conv_b: (8,); lin_w: (8, 8).

    Returns (N, 16) == cat([v1.reshape(N, 8), v3], axis=1).
    """
    N = x_nchw.shape[0]
    assert x_nchw.shape[1:] == (3, 1, 1), "forward only type-checks for 1x1 spatial"

    x2d = x_nchw.reshape(N, _C_IN).astype(jnp.float32)          # (N, 3)

    # Fused parameters (exact up to f32 reassociation):
    #   v1 = x @ Wc^T + bc ;   v3 = v1 @ Wl^T = x @ (Wc^T Wl^T) + bc Wl^T
    wc_t = conv_w.reshape(8, 3).T.astype(jnp.float32)           # (3, 8)
    bc = conv_b.reshape(1, 8).astype(jnp.float32)               # (1, 8)
    wl_t = lin_w.T.astype(jnp.float32)                          # (8, 8)
    w_cat = jnp.concatenate([wc_t, wc_t @ wl_t], axis=1)        # (3, 16)
    b_cat = jnp.concatenate([bc, bc @ wl_t], axis=1)            # (1, 16)

    # Lane-dense packing: packed_x[i, 3j:3j+3] = x[8i+j];
    # packed_out[i, 16j:16j+16] = out[8i+j]  =>  block-diagonal weight.
    w_block = jnp.kron(jnp.eye(_PACK, dtype=jnp.float32), w_cat)  # (24, 128)
    b_tile = jnp.tile(b_cat, (1, _PACK))                          # (1, 128)

    n_pad = (-N) % _PACK                       # at most 7 rows of padding
    if n_pad:
        x2d = jnp.pad(x2d, ((0, n_pad), (0, 0)))
    n_rows = N + n_pad
    n8 = n_rows // _PACK
    x_packed = x2d.reshape(n8, _K_PACKED)       # (N8, 24)

    bm = n8 if n8 <= _BM_MAX else _BM_MAX       # full-extent block when small
    grid = (pl.cdiv(n8, bm),)                   # ragged last block masked by Pallas

    cost = pl.CostEstimate(
        flops=2 * n8 * _K_PACKED * _N_PACKED,
        transcendentals=0,
        bytes_accessed=4 * (n8 * _K_PACKED + n8 * _N_PACKED
                            + _K_PACKED * _N_PACKED + _N_PACKED),
    )

    out_packed = pl.pallas_call(
        _fused_kernel,
        out_shape=jax.ShapeDtypeStruct((n8, _N_PACKED), jnp.float32),
        grid=grid,
        in_specs=[
            pl.BlockSpec((bm, _K_PACKED), lambda i: (i, 0)),
            pl.BlockSpec((_K_PACKED, _N_PACKED), lambda i: (0, 0)),  # resident
            pl.BlockSpec((1, _N_PACKED), lambda i: (0, 0)),          # resident
        ],
        out_specs=pl.BlockSpec((bm, _N_PACKED), lambda i: (i, 0)),
        compiler_params=pltpu.CompilerParams(
            dimension_semantics=("parallel",)),
        cost_estimate=cost,
    )(x_packed, w_block, b_tile)

    out = out_packed.reshape(n_rows, _C_OUT)    # free row-major view
    if n_pad:
        out = out[:N]
    return out


def _reference(x_nchw, conv_w, conv_b, lin_w):
    N = x_nchw.shape[0]
    x2d = x_nchw.reshape(N, 3)
    v1 = x2d @ conv_w.reshape(8, 3).T + conv_b[None, :]
    v3 = v1 @ lin_w.T
    return jnp.concatenate([v1, v3], axis=1)


if __name__ == "__main__":
    key = jax.random.PRNGKey(0)
    k_x, k_wc, k_bc, k_wl, k_x2, k_x3 = jax.random.split(key, 6)

    # Deterministic synthetic parameters (shapes from Model.__init__)
    conv_w = jax.random.normal(k_wc, (8, 3, 1, 1), dtype=jnp.float32) * 0.1
    conv_b = jax.random.normal(k_bc, (8,), dtype=jnp.float32) * 0.1
    lin_w = jax.random.normal(k_wl, (8, 8), dtype=jnp.float32) * 0.1

    # Primary small test (N = 8, single packed row)
    N = 8
    x = jax.random.normal(k_x, (N, 3, 1, 1), dtype=jnp.float32)
    out = jax.block_until_ready(model_forward(x, conv_w, conv_b, lin_w))
    ref = _reference(x, conv_w, conv_b, lin_w)
    assert out.shape == (N, 16)
    assert jnp.allclose(out, ref, atol=1e-5, rtol=1e-5)

    # Secondary test: N not a multiple of 8 (exercises the tiny pad + slice path)
    N2 = 2050
    x2 = jax.random.normal(k_x2, (N2, 3, 1, 1), dtype=jnp.float32)
    out2 = jax.block_until_ready(model_forward(x2, conv_w, conv_b, lin_w))
    ref2 = _reference(x2, conv_w, conv_b, lin_w)
    assert out2.shape == (N2, 16)
    assert jnp.allclose(out2, ref2, atol=1e-5, rtol=1e-5)

    # Tertiary test: multi-step grid with a ragged (masked) last block
    N3 = _PACK * _BM_MAX + 40          # n8 = 4101 -> grid of 2 steps
    x3 = jax.random.normal(k_x3, (N3, 3, 1, 1), dtype=jnp.float32)
    out3 = jax.block_until_ready(model_forward(x3, conv_w, conv_b, lin_w))
    ref3 = _reference(x3, conv_w, conv_b, lin_w)
    assert out3.shape == (N3, 16)
    assert jnp.allclose(out3, ref3, atol=1e-5, rtol=1e-5)

    print("KERNEL_OK")
</pallas_src>

<mosaic_0001>
module attributes {stable_mosaic.version = 11 : i64} {
  func.func @_fused_kernel(%arg0: i32, %arg1: memref<1x24xf32, #tpu.memory_space<vmem>>, %arg2: memref<24x128xf32, #tpu.memory_space<vmem>>, %arg3: memref<1x128xf32, #tpu.memory_space<vmem>>, %arg4: memref<1x128xf32, #tpu.memory_space<vmem>>) attributes {dimension_semantics = [#tpu.dimension_semantics<parallel>], iteration_bounds = array<i64: 1>, scalar_prefetch = 0 : i64, scratch_operands = 0 : i64, tpu.core_type = #tpu.core_type<tc>, window_params = [{transform_indices = @transform_0, window_bounds = array<i64: 1, 24>}, {pipeline_mode = #tpu.pipeline_mode<synchronous>, transform_indices = @transform_1, window_bounds = array<i64: 24, 128>}, {pipeline_mode = #tpu.pipeline_mode<synchronous>, transform_indices = @transform_2, window_bounds = array<i64: 1, 128>}, {transform_indices = @transform_3, window_bounds = array<i64: 1, 128>}]} {
    %c0 = arith.constant 0 : index
    %c0_0 = arith.constant 0 : index
    %0 = vector.load %arg1[%c0, %c0_0] : memref<1x24xf32, #tpu.memory_space<vmem>>, vector<1x24xf32>
    %c0_1 = arith.constant 0 : index
    %c0_2 = arith.constant 0 : index
    %1 = vector.load %arg2[%c0_1, %c0_2] : memref<24x128xf32, #tpu.memory_space<vmem>>, vector<24x128xf32>
    %cst = arith.constant dense<0.000000e+00> : vector<1x128xf32>
    %2 = tpu.matmul %0, %1, %cst {dimension_numbers = #tpu.dot_dimension_numbers<[1], [0], [0], [1], [0, 0, 1, 1], [], []>} : vector<1x24xf32>, vector<24x128xf32>, vector<1x128xf32> -> vector<1x128xf32>
    %c0_3 = arith.constant 0 : index
    %c0_4 = arith.constant 0 : index
    %3 = vector.load %arg3[%c0_3, %c0_4] : memref<1x128xf32, #tpu.memory_space<vmem>>, vector<1x128xf32>
    %4 = arith.addf %2, %3 : vector<1x128xf32>
    %c0_5 = arith.constant 0 : index
    %c0_6 = arith.constant 0 : index
    %5 = vector.load %arg4[%c0_5, %c0_6] : memref<1x128xf32, #tpu.memory_space<vmem>>, vector<1x128xf32>
    tpu.vector_store %arg4[%c0_5, %c0_6], %4 {strides = array<i32>} : memref<1x128xf32, #tpu.memory_space<vmem>>, vector<1x128xf32>,
    return
  }
  func.func @transform_0(%arg0: i32) -> (i32, i32) {
    %c0_i32 = arith.constant 0 : i32
    %c0_i32_0 = arith.constant 0 : i32
    return %arg0, %c0_i32 : i32, i32
  }
  func.func @transform_1(%arg0: i32) -> (i32, i32) {
    %c0_i32 = arith.constant 0 : i32
    %c0_i32_0 = arith.constant 0 : i32
    %c0_i32_1 = arith.constant 0 : i32
    return %c0_i32, %c0_i32_0 : i32, i32
  }
  func.func @transform_2(%arg0: i32) -> (i32, i32) {
    %c0_i32 = arith.constant 0 : i32
    %c0_i32_0 = arith.constant 0 : i32
    %c0_i32_1 = arith.constant 0 : i32
    return %c0_i32, %c0_i32_0 : i32, i32
  }
  func.func @transform_3(%arg0: i32) -> (i32, i32) {
    %c0_i32 = arith.constant 0 : i32
    %c0_i32_0 = arith.constant 0 : i32
    return %arg0, %c0_i32 : i32, i32
  }
}

</mosaic_0001>

<llo_original>
// kernel: model_forward.1
$region0: #{model_forward.1}
  #allocation0 [shape = 'u32[]', space=smem, size = 0x4, offset = 0x4, fixed_abs, tag = 'smem constant byte address 0x4 - core index']
  #allocation1 [shape = 'u32[72,128]{1,0:T(1,128)}', space=vmem, size = 0x9000, scoped, tag = 'internal scratch']
  %s0 = inlined_call_operand.vmem [shape: f32[1,24], index: 0, kind: input, shape index: {}]
  %s1 = inlined_call_operand.vmem [shape: f32[24,128], index: 1, kind: input, shape index: {}]
  %s2 = inlined_call_operand.vmem [shape: f32[1,128], index: 2, kind: input, shape index: {}]
  %s3 = inlined_call_operand.vmem [shape: f32[1,128], index: 3, kind: output, shape index: {}]
  %s4 = sld [smem:[#allocation0]]
  $region22: #{model_forward.1} parent=0
    _
  %s6 = ssub.s32 1, %s4
  %s7 = scalar_select 0, %s6, %s4
  // Predicated region
  $region2: #{model_forward.1} parent=0 // pred_check
    _
  $region3: #{model_forward.1} parent=0 // pred_check_branch
    %9 = sbr.rel (0) target = $region5
  $region4: #{model_forward.1} parent=0 // pred_region
    _
  $region5: #{model_forward.1} parent=0 // pred_fallthru
    _
  // Predicated region
  $region6: #{model_forward.1} parent=0 // pred_check
    _
  $region7: #{model_forward.1} parent=0 // pred_check_branch
    %11 = sbr.rel (0) target = $region9
  $region8: #{model_forward.1} parent=0 // pred_region
    _
  $region9: #{model_forward.1} parent=0 // pred_fallthru
    _
  // Predicated region
  $region10: #{model_forward.1} parent=0 // pred_check
    _
  $region11: #{model_forward.1} parent=0 // pred_check_branch
    %13 = sbr.rel (0) target = $region13
  $region12: #{model_forward.1} parent=0 // pred_region
    _
  $region13: #{model_forward.1} parent=0 // pred_fallthru
    _
  %v14 = vld [vmem:[%s0] sm:$0x1]
  %v15 = vld [vmem:[%s1] sm:$0xff]
  %v16 = vld [vmem:[%s1 + $0x8] sm:$0xff]
  %v17 = vld [vmem:[%s1 + $0x10] sm:$0xff]
  %v18 = vld [vmem:[%s2] sm:$0x1]
  %vm19 = vcmask 195584
  %v21 = vsel %vm19, %v14, 0
  %23 = vmatpush.msra.mxu0 0.0
  %24 = vmatpush.msra.mxu0 0.0
  %25 = vmatpush.msra.mxu0 0.0
  %26 = vmatpush.msra.mxu0 0.0
  %27 = vmatpush.msra.mxu0 0.0
  %28 = vmatpush.msra.mxu0 0.0
  %29 = vmatpush.msra.mxu0 0.0
  %30 = vmatpush.msra.mxu0 0.0
  %31 = vmatpush.msra.mxu0 0.0
  %32 = vmatpush.msra.mxu0 0.0
  %33 = vmatpush.msra.mxu0 0.0
  %34 = vmatpush.msra.mxu0 0.0
  %35 = vmatpush.msra.mxu0 0.0
  %36 = vmatpush.msra.mxu0 %v17
  %37 = vmatpush.msra.mxu0 %v16
  %38 = vmatpush.msra.mxu0 %v15
  %39 = vmatmul.f32.gmra.mxu0 %v21
  %v40 = vpop.f32.mrf.mxu0
  %v41 = vadd.f32 %v18, %v40
  %42 = vdwg.mxu0
  %43 = vst [vmem:[%s3] sm:$0x1] %v41
  // Predicated region
  $region14: #{model_forward.1} parent=0 // pred_check
    _
  $region15: #{model_forward.1} parent=0 // pred_check_branch
    %45 = sbr.rel (0) target = $region17
  $region16: #{model_forward.1} parent=0 // pred_region
    _
  $region17: #{model_forward.1} parent=0 // pred_fallthru
    _
  // Predicated region
  $region18: #{model_forward.1} parent=0 // pred_check
    _
  $region19: #{model_forward.1} parent=0 // pred_check_branch
    %47 = sbr.rel (0) target = $region21
  $region20: #{model_forward.1} parent=0 // pred_region
    _
  $region21: #{model_forward.1} parent=0 // pred_fallthru
    _

</llo_original>
